<compile_context>
chip_gen: v6e
topology: v6e:2x2x1
jax: 0.10.0
libtpu: 0.0.40
codegen_flags: <defaults>
</compile_context>

<pallas_src>
import math
from functools import partial

import numpy as np
import jax
import jax.numpy as jnp
from jax import lax
from jax.experimental import pallas as pl
from jax.experimental.pallas import tpu as pltpu


# ---------------------------------------------------------------------------
# host-side helpers (identical math to the reference module)
# ---------------------------------------------------------------------------
def find_nearest_value(n):
    if n <= 160:
        return 64
    elif n <= 640:
        return 256
    else:
        return 1024


def adaptive_schedule(t, curvature=10):
    t = (1000 - t) / 1000
    start_clusters, end_clusters = 64, 1024
    n_clusters = (end_clusters - start_clusters) * (
        (math.exp(curvature * t) - 1) / (math.exp(curvature) - 1)) + start_clusters
    rounded = find_nearest_value(n_clusters)
    patch_size = math.sqrt(1024 / rounded)
    k_neighbors = 4096 / (32 / patch_size) ** 2
    return int(patch_size), int(k_neighbors)


def get_1d_sincos_pos_embed_from_grid(embed_dim, pos):
    omega = np.arange(embed_dim // 2, dtype=np.float64)
    omega /= embed_dim / 2.0
    omega = 1.0 / 10000 ** omega
    pos = pos.reshape(-1)
    out = np.einsum('m,d->md', pos, omega)
    return np.concatenate([np.sin(out), np.cos(out)], axis=1)


def get_2d_sincos_pos_embed(embed_dim, grid_size):
    grid_h = np.arange(grid_size, dtype=np.float32)
    grid_w = np.arange(grid_size, dtype=np.float32)
    grid = np.meshgrid(grid_w, grid_h)
    grid = np.stack(grid, axis=0).reshape([2, 1, grid_size, grid_size])
    emb_h = get_1d_sincos_pos_embed_from_grid(embed_dim // 2, grid[0])
    emb_w = get_1d_sincos_pos_embed_from_grid(embed_dim // 2, grid[1])
    return np.concatenate([emb_h, emb_w], axis=1)


def extract_patches(x, p):
    # x: (N, C, H, W) -> (N, T, C*p*p); flatten order (C, ph, pw) matches a
    # PyTorch Conv2d patch-embedding weight layout.
    N, C, H, W = x.shape
    gh, gw = H // p, W // p
    x = x.reshape(N, C, gh, p, gw, p)
    x = jnp.transpose(x, (0, 2, 4, 1, 3, 5))
    return x.reshape(N, gh * gw, C * p * p)


def unpatchify(x, p, out_c):
    N, T, _ = x.shape
    h = w = int(math.isqrt(T))
    x = x.reshape(N, h, w, p, p, out_c)
    x = jnp.einsum('nhwpqc->nchpwq', x)
    return x.reshape(N, out_c, h * p, w * p)


def resize_pos_embed(pos_embed, old_size, new_size):
    if tuple(old_size) == tuple(new_size):
        return pos_embed
    D = pos_embed.shape[-1]
    pe = pos_embed.reshape(1, old_size[0], old_size[1], D)
    pe = jax.image.resize(pe, (1, new_size[0], new_size[1], D),
                          method='bicubic', antialias=True)
    return pe.reshape(1, new_size[0] * new_size[1], D)


def timestep_embedding(t, dim, max_period=10000):
    half = dim // 2
    freqs = jnp.exp(-math.log(max_period) *
                    jnp.arange(half, dtype=jnp.float32) / half)
    args = t[:, None].astype(jnp.float32) * freqs[None]
    return jnp.concatenate([jnp.cos(args), jnp.sin(args)], axis=-1)


def _vmem_limit_bytes():
    """~110 MiB on 128-MiB-VMEM chips (v5e/v6e), capped below physical on v7x."""
    cap = 64 * 1024 * 1024
    try:
        info = pltpu.get_tpu_info()
        cap = int(getattr(info, 'vmem_capacity_bytes', cap))
    except Exception:
        pass
    return max(32 * 1024 * 1024, min(cap - 8 * 1024 * 1024, 110 * 1024 * 1024))


# ---------------------------------------------------------------------------
# Pallas kernels
# ---------------------------------------------------------------------------
def _linear2d_kernel(x_ref, w_ref, b_ref, o_ref):
    # bf16 MXU matmul with f32 accumulation.
    o_ref[...] = (jnp.dot(x_ref[...].astype(jnp.bfloat16), w_ref[...],
                          preferred_element_type=jnp.float32) + b_ref[...])


def pallas_linear2d(x, w, b, *, block_m=512, block_n=1024):
    """y = x @ w + b, tiled over M and N so weights of any width fit VMEM."""
    M, K = x.shape
    N = w.shape[1]
    if w.dtype != jnp.bfloat16:     # weights are bf16 at init; this is a no-op
        w = w.astype(jnp.bfloat16)
    b = b.reshape(1, -1)
    tm = M if M <= block_m else block_m
    tn = N if N <= block_n else block_n
    return pl.pallas_call(
        _linear2d_kernel,
        out_shape=jax.ShapeDtypeStruct((M, N), jnp.float32),
        grid=(pl.cdiv(M, tm), pl.cdiv(N, tn)),
        in_specs=[pl.BlockSpec((tm, K), lambda i, j: (i, 0)),
                  pl.BlockSpec((K, tn), lambda i, j: (0, j)),
                  pl.BlockSpec((1, tn), lambda i, j: (0, j))],
        out_specs=pl.BlockSpec((tm, tn), lambda i, j: (i, j)),
        compiler_params=pltpu.CompilerParams(
            dimension_semantics=("parallel", "parallel")),
    )(x, w, b)


def _layernorm(v, eps):
    mu = jnp.mean(v, axis=-1, keepdims=True)
    var = jnp.mean(jnp.square(v - mu), axis=-1, keepdims=True)
    return (v - mu) * lax.rsqrt(var + eps)


def _gelu_tanh(x):
    return 0.5 * x * (1.0 + jnp.tanh(0.7978845608028654 *
                                     (x + 0.044715 * x * x * x)))


def _dit_block_kernel(x_ref, mod_ref, qkvw_ref, qkvb_ref, projw_ref, projb_ref,
                      w1_ref, b1_ref, w2_ref, b2_ref, o_ref,
                      *, num_heads, head_dim, eps, gh, gw, wh, ww, mlp_chunk):
    """One transformer block for one batch tile (Bt elements).

    Grid is (batch_tile, layer); the token state lives in the revisited output
    block across the layer axis, so layer l+1 weights are prefetched by the
    Pallas pipeline while layer l computes, and each weight fetch is amortized
    over Bt batch elements.
    """
    D = num_heads * head_dim
    Bt, T, _ = o_ref.shape

    @pl.when(pl.program_id(1) == 0)
    def _init():
        o_ref[...] = x_ref[...]

    x = o_ref[...]                       # (Bt, T, D) f32, resident across layers
    mod = mod_ref[0]                     # (Bt, 6D) precomputed adaLN modulation

    def mchunk(i):
        return mod[:, i * D:(i + 1) * D][:, None, :]          # (Bt, 1, D)

    shift_msa, scale_msa, gate_msa = mchunk(0), mchunk(1), mchunk(2)
    shift_mlp, scale_mlp, gate_mlp = mchunk(3), mchunk(4), mchunk(5)

    # --- additive neighborhood mask generated in-kernel (no HBM/VMEM tensor) ---
    if wh < gh or ww < gw:
        qi = lax.broadcasted_iota(jnp.int32, (T, T), 0)
        ki = lax.broadcasted_iota(jnp.int32, (T, T), 1)
        if (gw & (gw - 1)) == 0:                      # power-of-two grid width
            sh = gw.bit_length() - 1
            rq, cq = qi >> sh, qi & (gw - 1)
            rk, ck = ki >> sh, ki & (gw - 1)
        else:
            rq, cq = qi // gw, qi % gw
            rk, ck = ki // gw, ki % gw
        si = jnp.clip(rq - wh // 2, 0, gh - wh)
        sj = jnp.clip(cq - ww // 2, 0, gw - ww)
        inside = ((rk >= si) & (rk < si + wh) & (ck >= sj) & (ck < sj + ww))
        mask = jnp.where(inside, 0.0, -1e9).astype(jnp.float32)
    else:
        mask = None
    # TODO(synk): for the fine-patch regime (T=1024, 2x2 window) add block-sparse
    # kv skipping (scalar-prefetched key ranges + pl.when) instead of dense TxT.

    # --- attention branch: fused QKV, per-head proj accumulation (no concat) ---
    xm = _layernorm(x, eps) * (1.0 + scale_msa) + shift_msa
    qkv = (jnp.dot(xm.reshape(Bt * T, D).astype(jnp.bfloat16), qkvw_ref[0],
                   preferred_element_type=jnp.float32) + qkvb_ref[0])
    qkv = qkv.reshape(Bt, T, 3 * D)

    scale = 1.0 / math.sqrt(head_dim)
    attn = jnp.zeros((Bt, T, D), jnp.float32)
    # TODO(synk): head_dim is not a 128-lane multiple at DiT widths; reorder
    # qkv_w so per-head q/k/v land on lane boundaries to avoid slice relayouts.
    for h in range(num_heads):
        q = (qkv[:, :, h * head_dim:(h + 1) * head_dim] * scale).astype(jnp.bfloat16)
        k = qkv[:, :, D + h * head_dim:D + (h + 1) * head_dim].astype(jnp.bfloat16)
        v = qkv[:, :, 2 * D + h * head_dim:2 * D + (h + 1) * head_dim].astype(jnp.bfloat16)
        s = jnp.einsum('bqd,bkd->bqk', q, k, preferred_element_type=jnp.float32)
        if mask is not None:
            s = s + mask[None]
        s = s - jnp.max(s, axis=-1, keepdims=True)     # f32 softmax stats
        p = jnp.exp(s)
        p = p * pl.reciprocal(jnp.sum(p, axis=-1, keepdims=True), approx=True)
        oh = jnp.einsum('bqk,bkd->bqd', p.astype(jnp.bfloat16), v,
                        preferred_element_type=jnp.float32)
        attn = attn + jnp.einsum('btk,kd->btd', oh.astype(jnp.bfloat16),
                                 projw_ref[0, h * head_dim:(h + 1) * head_dim, :],
                                 preferred_element_type=jnp.float32)
    attn = attn + projb_ref[0]
    x = x + gate_msa * attn

    # --- MLP branch (chunked over Dm to bound f32 intermediates) ---
    Dm = w1_ref.shape[-1]
    xm2 = _layernorm(x, eps) * (1.0 + scale_mlp) + shift_mlp
    xf = xm2.reshape(Bt * T, D).astype(jnp.bfloat16)
    acc = jnp.zeros((Bt * T, D), jnp.float32)
    nchunks = -(-Dm // mlp_chunk)
    for ci in range(nchunks):
        cs = ci * mlp_chunk
        ce = min(Dm, cs + mlp_chunk)
        h1 = (jnp.dot(xf, w1_ref[0, :, cs:ce],
                      preferred_element_type=jnp.float32) + b1_ref[0, :, cs:ce])
        h1 = _gelu_tanh(h1)
        acc = acc + jnp.dot(h1.astype(jnp.bfloat16), w2_ref[0, cs:ce, :],
                            preferred_element_type=jnp.float32)
    mlp = acc.reshape(Bt, T, D) + b2_ref[0]
    o_ref[...] = x + gate_mlp * mlp


def run_dit_blocks(x, mod, p, *, num_heads, gh, gw, k_neighbors,
                   max_batch_tile=4, mlp_chunk=2048):
    """Run ALL transformer blocks in a single pallas_call, grid=(N//Bt, depth)."""
    N, T, D = x.shape
    L, _, Dm = p['w1'].shape
    assert D % num_heads == 0 and T == gh * gw
    head_dim = D // num_heads

    Bt = min(N, max_batch_tile)
    while N % Bt:
        Bt -= 1
    Nb = N // Bt

    win = max(1, int(round(math.sqrt(k_neighbors))))
    wh, ww = min(win, gh), min(win, gw)

    # adaLN rows rearranged so grid step (b, l) gets a (Bt, 6D) slab.
    mod_r = (mod.reshape(N, L, 6 * D).transpose(1, 0, 2)
                .reshape(L, Nb, Bt, 6 * D).reshape(L * Nb, Bt, 6 * D))

    kern = partial(_dit_block_kernel, num_heads=num_heads, head_dim=head_dim,
                   eps=1e-6, gh=gh, gw=gw, wh=wh, ww=ww, mlp_chunk=mlp_chunk)

    # TODO(synk): at full DiT-XL width on v7x (64 MiB VMEM) the per-layer weight
    # blocks should additionally be tiled (extra "arbitrary" grid axes or manual
    # DMA from pl.ANY) instead of being fetched as whole (D,3D)/(D,Dm) blocks;
    # the x input could also use pipeline_mode=pl.Buffered(1) to save a buffer.
    return pl.pallas_call(
        kern,
        out_shape=jax.ShapeDtypeStruct((N, T, D), jnp.float32),
        grid=(Nb, L),
        in_specs=[
            pl.BlockSpec((Bt, T, D), lambda b, l: (b, 0, 0)),              # x (l==0)
            pl.BlockSpec((1, Bt, 6 * D), lambda b, l: (l * Nb + b, 0, 0)), # adaLN
            pl.BlockSpec((1, D, 3 * D), lambda b, l: (l, 0, 0)),           # qkv_w
            pl.BlockSpec((1, 1, 3 * D), lambda b, l: (l, 0, 0)),           # qkv_b
            pl.BlockSpec((1, D, D), lambda b, l: (l, 0, 0)),               # proj_w
            pl.BlockSpec((1, 1, D), lambda b, l: (l, 0, 0)),               # proj_b
            pl.BlockSpec((1, D, Dm), lambda b, l: (l, 0, 0)),              # w1
            pl.BlockSpec((1, 1, Dm), lambda b, l: (l, 0, 0)),              # b1
            pl.BlockSpec((1, Dm, D), lambda b, l: (l, 0, 0)),              # w2
            pl.BlockSpec((1, 1, D), lambda b, l: (l, 0, 0)),               # b2
        ],
        out_specs=pl.BlockSpec((Bt, T, D), lambda b, l: (b, 0, 0)),
        compiler_params=pltpu.CompilerParams(
            dimension_semantics=("parallel", "arbitrary"),
            vmem_limit_bytes=_vmem_limit_bytes()),
    )(x, mod_r, p['qkv_w'], p['qkv_b'], p['proj_w'], p['proj_b'],
      p['w1'], p['b1'], p['w2'], p['b2'])


def _final_layer_kernel(x_ref, ss_ref, linw_ref, linb_ref, o_ref, *, eps):
    x = x_ref[0]                     # (T, D)
    D = x.shape[-1]
    ss = ss_ref[0]                   # (1, 2D)
    shift, scale = ss[:, :D], ss[:, D:]
    xm = _layernorm(x, eps) * (1.0 + scale) + shift
    o_ref[0] = (jnp.dot(xm.astype(jnp.bfloat16), linw_ref[...],
                        preferred_element_type=jnp.float32) + linb_ref[...])


def run_final_layer(x, shift_scale, p):
    N, T, D = x.shape
    out_pad = p['lin_w'].shape[1]    # lane-dense padded output width
    ss = shift_scale.reshape(N, 1, 2 * D)
    kern = partial(_final_layer_kernel, eps=1e-6)
    return pl.pallas_call(
        kern,
        out_shape=jax.ShapeDtypeStruct((N, T, out_pad), jnp.float32),
        grid=(N,),
        in_specs=[
            pl.BlockSpec((1, T, D), lambda b: (b, 0, 0)),
            pl.BlockSpec((1, 1, 2 * D), lambda b: (b, 0, 0)),
            pl.BlockSpec((D, out_pad), lambda b: (0, 0)),
            pl.BlockSpec((1, out_pad), lambda b: (0, 0)),
        ],
        out_specs=pl.BlockSpec((1, T, out_pad), lambda b: (b, 0, 0)),
        compiler_params=pltpu.CompilerParams(dimension_semantics=("parallel",)),
    )(x, ss, p['lin_w'], p['lin_b'])


# ---------------------------------------------------------------------------
# parameter construction (deterministic, synthetic)
# ---------------------------------------------------------------------------
def init_params(key, *, in_channels, hidden, depth, num_heads, num_classes,
                mlp_ratio=4.0, learn_sigma=True):
    out_channels = in_channels * 2 if learn_sigma else in_channels
    mlp_hidden = int(hidden * mlp_ratio)
    keys = list(jax.random.split(key, 512))
    kit = iter(keys)
    D = hidden

    def xavier(fi, fo):
        lim = math.sqrt(6.0 / (fi + fo))
        return jax.random.uniform(next(kit), (fi, fo), jnp.float32, -lim, lim)

    def normal(shape, std=0.02):
        return std * jax.random.normal(next(kit), shape, jnp.float32)

    # NOTE: the reference zero-inits adaLN / final linear weights; here we use
    # small random values so the kernel path produces non-trivial outputs.
    params = {
        'hidden_size': hidden,
        'out_channels': out_channels,
        'base_grid': (4, 4),
        'pos_embed': jnp.asarray(
            get_2d_sincos_pos_embed(hidden, 4), jnp.float32)[None],
        'patch_embed': {p: (xavier(in_channels * p * p, hidden).astype(jnp.bfloat16),
                            jnp.zeros((hidden,), jnp.float32))
                        for p in (1, 2, 4)},
        't_w1': normal((256, hidden)).astype(jnp.bfloat16),
        't_b1': jnp.zeros((hidden,), jnp.float32),
        't_w2': normal((hidden, hidden)).astype(jnp.bfloat16),
        't_b2': jnp.zeros((hidden,), jnp.float32),
        'y_table': normal((num_classes + 1, hidden)),
    }

    # Per-layer weights, stacked over a leading depth axis so a single
    # pallas_call can grid over layers and prefetch next-layer weights; all
    # matmul weights are stored in bf16 (halves HBM weight stream & VMEM).
    ada_w, qkv_w, proj_w, w1, w2 = [], [], [], [], []
    for _ in range(depth):
        ada_w.append(normal((D, 6 * D)))
        qkv_w.append(xavier(D, 3 * D))
        proj_w.append(xavier(D, D))
        w1.append(xavier(D, mlp_hidden))
        w2.append(xavier(mlp_hidden, D))
    params['blocks'] = dict(
        ada_w_cat=jnp.concatenate(ada_w, axis=1).astype(jnp.bfloat16),  # (D, L*6D)
        ada_b_cat=jnp.zeros((depth * 6 * D,), jnp.float32),
        qkv_w=jnp.stack(qkv_w).astype(jnp.bfloat16),                    # (L, D, 3D)
        qkv_b=jnp.zeros((depth, 1, 3 * D), jnp.float32),
        proj_w=jnp.stack(proj_w).astype(jnp.bfloat16),                  # (L, D, D)
        proj_b=jnp.zeros((depth, 1, D), jnp.float32),
        w1=jnp.stack(w1).astype(jnp.bfloat16),                          # (L, D, Dm)
        b1=jnp.zeros((depth, 1, mlp_hidden), jnp.float32),
        w2=jnp.stack(w2).astype(jnp.bfloat16),                          # (L, Dm, D)
        b2=jnp.zeros((depth, 1, D), jnp.float32),
    )

    params['final'] = {}
    for p in (1, 2, 4):
        out_dim = p * p * out_channels
        out_pad = max(128, ((out_dim + 127) // 128) * 128)   # lane-dense stores
        lin_w = normal((D, out_dim))
        lin_w = jnp.pad(lin_w, ((0, 0), (0, out_pad - out_dim))).astype(jnp.bfloat16)
        params['final'][p] = dict(
            ada_w=normal((D, 2 * D)).astype(jnp.bfloat16),
            ada_b=jnp.zeros((2 * D,), jnp.float32),
            lin_w=lin_w,
            lin_b=jnp.zeros((1, out_pad), jnp.float32),
            out_dim=out_dim,
        )
    return params


# ---------------------------------------------------------------------------
# full forward pass
# ---------------------------------------------------------------------------
def dit_dmp_forward(params, x, t, y, *, num_heads):
    N, C, H, W = x.shape
    D = params['hidden_size']
    # Host-side schedule branch on t[0] (matches the reference, which branches
    # in Python); assumes all batch elements share a timestep.
    ps_int, k_neighbors = adaptive_schedule(float(np.asarray(t)[0]))

    # FlexiPatchEmbed: patchify + linear projection (Pallas matmul).
    # TODO(synk): FlexiPatchEmbed's pseudo-inverse resize of the base 8x8 conv
    # weight is not reproduced (class not provided); per-patch-size weights are
    # created directly instead.
    patches = extract_patches(x, ps_int)          # (N, T, C*p*p)
    T, K = patches.shape[1], patches.shape[2]
    pw, pb = params['patch_embed'][ps_int]
    tok = pallas_linear2d(patches.reshape(N * T, K), pw, pb).reshape(N, T, D)

    # positional embedding (bicubic resize of the base 4x4 sincos grid)
    gh, gw = H // ps_int, W // ps_int
    pos = resize_pos_embed(params['pos_embed'], params['base_grid'], (gh, gw))
    tok = tok + pos.astype(jnp.float32)

    # timestep + label embedding
    tfreq = timestep_embedding(jnp.asarray(t, jnp.float32), 256)
    h1 = pallas_linear2d(tfreq, params['t_w1'], params['t_b1'])
    h1 = h1 * jax.nn.sigmoid(h1)
    t_emb = pallas_linear2d(h1, params['t_w2'], params['t_b2'])
    y_emb = jnp.take(params['y_table'], jnp.asarray(y), axis=0)
    c = t_emb + y_emb                             # (N, D)
    cs = c * jax.nn.sigmoid(c)                    # SiLU shared by every adaLN

    # adaLN modulation for ALL layers in one wide (M,N-tiled) Pallas matmul.
    blk = params['blocks']
    mod = pallas_linear2d(cs, blk['ada_w_cat'], blk['ada_b_cat'])   # (N, L*6D)

    tok = run_dit_blocks(tok, mod, blk, num_heads=num_heads,
                         gh=gh, gw=gw, k_neighbors=k_neighbors)

    fin = params['final'][ps_int]
    shift_scale = pallas_linear2d(cs, fin['ada_w'], fin['ada_b'])   # (N, 2D)
    out_tok = run_final_layer(tok, shift_scale, fin)
    out_tok = out_tok[..., :fin['out_dim']]       # drop lane padding
    return unpatchify(out_tok, ps_int, params['out_channels'])


# ---------------------------------------------------------------------------
if __name__ == "__main__":
    key = jax.random.PRNGKey(0)
    k_x, k_p = jax.random.split(key)

    # small config: N=2, C=4, H=W=16, hidden=32, depth=2, heads=4, classes=10
    N, C, H, W = 2, 4, 16, 16
    hidden, depth, heads, num_classes = 32, 2, 4, 10

    x = jax.random.normal(k_x, (N, C, H, W), jnp.float32)
    t = jnp.full((N,), 100.0, jnp.float32)   # -> patch_size 2, k_neighbors 16
    y = jnp.array([1, 3], jnp.int32)

    params = init_params(k_p, in_channels=C, hidden=hidden, depth=depth,
                         num_heads=heads, num_classes=num_classes)

    out = dit_dmp_forward(params, x, t, y, num_heads=heads)
    out = jax.block_until_ready(out)

    assert out.shape == (N, 2 * C, H, W), out.shape
    assert bool(jnp.all(jnp.isfinite(out)))
    print("KERNEL_OK")
</pallas_src>

<mosaic_0001>
module attributes {stable_mosaic.version = 11 : i64} {
  func.func @_linear2d_kernel(%arg0: i32, %arg1: i32, %arg2: memref<128x16xf32, #tpu.memory_space<vmem>>, %arg3: memref<16x32xbf16, #tpu.memory_space<vmem>>, %arg4: memref<1x32xf32, #tpu.memory_space<vmem>>, %arg5: memref<128x32xf32, #tpu.memory_space<vmem>>) attributes {dimension_semantics = [#tpu.dimension_semantics<parallel>, #tpu.dimension_semantics<parallel>], iteration_bounds = array<i64: 1, 1>, scalar_prefetch = 0 : i64, scratch_operands = 0 : i64, tpu.core_type = #tpu.core_type<tc>, window_params = [{transform_indices = @transform_0, window_bounds = array<i64: 128, 16>}, {transform_indices = @transform_1, window_bounds = array<i64: 16, 32>}, {transform_indices = @transform_2, window_bounds = array<i64: 1, 32>}, {transform_indices = @transform_3, window_bounds = array<i64: 128, 32>}]} {
    %c0 = arith.constant 0 : index
    %c0_0 = arith.constant 0 : index
    %0 = vector.load %arg2[%c0, %c0_0] : memref<128x16xf32, #tpu.memory_space<vmem>>, vector<128x16xf32>
    %1 = arith.truncf %0 : vector<128x16xf32> to vector<128x16xbf16>
    %c0_1 = arith.constant 0 : index
    %c0_2 = arith.constant 0 : index
    %2 = vector.load %arg3[%c0_1, %c0_2] : memref<16x32xbf16, #tpu.memory_space<vmem>>, vector<16x32xbf16>
    %cst = arith.constant dense<0.000000e+00> : vector<128x32xf32>
    %3 = tpu.matmul %1, %2, %cst {dimension_numbers = #tpu.dot_dimension_numbers<[1], [0], [0], [1], [0, 0, 1, 1], [], []>} : vector<128x16xbf16>, vector<16x32xbf16>, vector<128x32xf32> -> vector<128x32xf32>
    %c0_3 = arith.constant 0 : index
    %c0_4 = arith.constant 0 : index
    %4 = vector.load %arg4[%c0_3, %c0_4] : memref<1x32xf32, #tpu.memory_space<vmem>>, vector<1x32xf32>
    %5 = vector.broadcast %4 : vector<1x32xf32> to vector<128x32xf32>
    %6 = arith.addf %3, %5 : vector<128x32xf32>
    %c0_5 = arith.constant 0 : index
    %c0_6 = arith.constant 0 : index
    %7 = vector.load %arg5[%c0_5, %c0_6] : memref<128x32xf32, #tpu.memory_space<vmem>>, vector<128x32xf32>
    tpu.vector_store %arg5[%c0_5, %c0_6], %6 {strides = array<i32>} : memref<128x32xf32, #tpu.memory_space<vmem>>, vector<128x32xf32>,
    return
  }
  func.func @transform_0(%arg0: i32, %arg1: i32) -> (i32, i32) {
    %c0_i32 = arith.constant 0 : i32
    %c0_i32_0 = arith.constant 0 : i32
    return %arg0, %c0_i32 : i32, i32
  }
  func.func @transform_1(%arg0: i32, %arg1: i32) -> (i32, i32) {
    %c0_i32 = arith.constant 0 : i32
    %c0_i32_0 = arith.constant 0 : i32
    return %c0_i32, %arg1 : i32, i32
  }
  func.func @transform_2(%arg0: i32, %arg1: i32) -> (i32, i32) {
    %c0_i32 = arith.constant 0 : i32
    %c0_i32_0 = arith.constant 0 : i32
    return %c0_i32, %arg1 : i32, i32
  }
  func.func @transform_3(%arg0: i32, %arg1: i32) -> (i32, i32) {
    %c0_i32 = arith.constant 0 : i32
    return %arg0, %arg1 : i32, i32
  }
}

</mosaic_0001>

<llo_original>
// kernel: tpu_custom_call.1
$region0: #{tpu_custom_call.1}
  #allocation0 [shape = 'u32[]', space=smem, size = 0x4, offset = 0x4, fixed_abs, tag = 'smem constant byte address 0x4 - core index']
  #allocation1 [shape = 'u32[144,128]{1,0:T(1,128)}', space=vmem, size = 0x12000, scoped, tag = 'internal scratch']
  %s0 = inlined_call_operand.vmem [shape: f32[128,16], index: 0, kind: input, shape index: {}]
  %s1 = inlined_call_operand.vmem [shape: bf16[16,32], index: 1, kind: input, shape index: {}]
  %s2 = inlined_call_operand.vmem [shape: f32[1,32], index: 2, kind: input, shape index: {}]
  %s3 = inlined_call_operand.vmem [shape: f32[128,32], index: 3, kind: output, shape index: {}]
  %s4 = sld [smem:[#allocation0]]
  $region22: #{tpu_custom_call.1} parent=0
    _
  %s6 = ssub.s32 1, %s4
  %s7 = scalar_select 0, %s6, %s4
  // Predicated region
  $region2: #{tpu_custom_call.1} parent=0 // pred_check
    _
  $region3: #{tpu_custom_call.1} parent=0 // pred_check_branch
    %9 = sbr.rel (0) target = $region5
  $region4: #{tpu_custom_call.1} parent=0 // pred_region
    _
  $region5: #{tpu_custom_call.1} parent=0 // pred_fallthru
    _
  // Predicated region
  $region6: #{tpu_custom_call.1} parent=0 // pred_check
    _
  $region7: #{tpu_custom_call.1} parent=0 // pred_check_branch
    %11 = sbr.rel (0) target = $region9
  $region8: #{tpu_custom_call.1} parent=0 // pred_region
    _
  $region9: #{tpu_custom_call.1} parent=0 // pred_fallthru
    _
  // Predicated region
  $region10: #{tpu_custom_call.1} parent=0 // pred_check
    _
  $region11: #{tpu_custom_call.1} parent=0 // pred_check_branch
    %13 = sbr.rel (0) target = $region13
  $region12: #{tpu_custom_call.1} parent=0 // pred_region
    _
  $region13: #{tpu_custom_call.1} parent=0 // pred_fallthru
    _
  %v15 = vld [vmem:[%s0] sm:$0xff]
  %v16 = vld [vmem:[%s0 + $0x8] sm:$0xff]
  %v17 = vld [vmem:[%s0 + $0x10] sm:$0xff]
  %v18 = vld [vmem:[%s0 + $0x18] sm:$0xff]
  %v19 = vld [vmem:[%s0 + $0x20] sm:$0xff]
  %v20 = vld [vmem:[%s0 + $0x28] sm:$0xff]
  %v21 = vld [vmem:[%s0 + $0x30] sm:$0xff]
  %v22 = vld [vmem:[%s0 + $0x38] sm:$0xff]
  %v23 = vld [vmem:[%s0 + $0x40] sm:$0xff]
  %v24 = vld [vmem:[%s0 + $0x48] sm:$0xff]
  %v25 = vld [vmem:[%s0 + $0x50] sm:$0xff]
  %v26 = vld [vmem:[%s0 + $0x58] sm:$0xff]
  %v27 = vld [vmem:[%s0 + $0x60] sm:$0xff]
  %v28 = vld [vmem:[%s0 + $0x68] sm:$0xff]
  %v29 = vld [vmem:[%s0 + $0x70] sm:$0xff]
  %v30 = vld [vmem:[%s0 + $0x78] sm:$0xff]
  %v31 = vpack.c.bf16 %v16, %v15
  %v32 = vpack.c.bf16 %v18, %v17
  %v33 = vpack.c.bf16 %v20, %v19
  %v34 = vpack.c.bf16 %v22, %v21
  %v35 = vpack.c.bf16 %v24, %v23
  %v36 = vpack.c.bf16 %v26, %v25
  %v37 = vpack.c.bf16 %v28, %v27
  %v38 = vpack.c.bf16 %v30, %v29
  %v39 = vld [vmem:[%s1] sm:$0xf]
  %v40 = vld [vmem:[%s1 + $0x4] sm:$0xf]
  %v41 = vld [vmem:[%s2] sm:$0x1]
  %v43 = vlaneseq
  %v44 = vshrl.u32 %v43, 7
  %v45 = vsub.s32 0, %v44
  %v46 = vrot.slane %v41, %v45
  %v50 = vunpack.c.l.b16 %v39
  %v51 = vunpack.c.l.b16 %v40
  %v52 = vpack.c.b16 %v51, %v50
  %vm54 = vcmask 130048
  %v56 = vsel %vm54, %v31, 0
  %v59 = vsel %vm54, %v32, 0
  %v62 = vsel %vm54, %v33, 0
  %v65 = vsel %vm54, %v34, 0
  %v68 = vsel %vm54, %v35, 0
  %v71 = vsel %vm54, %v36, 0
  %v74 = vsel %vm54, %v37, 0
  %v77 = vsel %vm54, %v38, 0
  %79 = vmatprep.subr.bf16.mxu0 0
  %80 = vmatpush1.bf16.msra.mxu0 0
  %81 = vmatprep.subr.bf16.mxu0 0
  %82 = vmatpush1.bf16.msra.mxu0 0
  %83 = vmatprep.subr.bf16.mxu0 0
  %84 = vmatpush1.bf16.msra.mxu0 0
  %85 = vmatprep.subr.bf16.mxu0 0
  %86 = vmatpush1.bf16.msra.mxu0 0
  %87 = vmatprep.subr.bf16.mxu0 0
  %88 = vmatpush1.bf16.msra.mxu0 0
  %89 = vmatprep.subr.bf16.mxu0 0
  %90 = vmatpush1.bf16.msra.mxu0 0
  %91 = vmatprep.subr.bf16.mxu0 0
  %92 = vmatpush1.bf16.msra.mxu0 0
  %93 = vmatprep.subr.bf16.mxu0 0
  %94 = vmatpush1.bf16.msra.mxu0 %v52
  %95 = vmatprep.subr.bf16.mxu0 0
  %96 = vmatpush2.bf16.msra.mxu0 0
  %97 = vmatprep.subr.bf16.mxu0 0
  %98 = vmatpush2.bf16.msra.mxu0 0
  %99 = vmatprep.subr.bf16.mxu0 0
  %100 = vmatpush2.bf16.msra.mxu0 0
  %101 = vmatprep.subr.bf16.mxu0 0
  %102 = vmatpush2.bf16.msra.mxu0 0
  %103 = vmatprep.subr.bf16.mxu0 0
  %104 = vmatpush2.bf16.msra.mxu0 0
  %105 = vmatprep.subr.bf16.mxu0 0
  %106 = vmatpush2.bf16.msra.mxu0 0
  %107 = vmatprep.subr.bf16.mxu0 0
  %108 = vmatpush2.bf16.msra.mxu0 0
  %109 = vmatprep.subr.bf16.mxu0 0
  %110 = vmatpush2.bf16.msra.mxu0 0
  %111 = vmatprep.mubr.bf16.mxu0 0
  %112 = vmatmul.mubr.bf16.gmra.mxu0 %v56
  %v113 = vpop.f32.mrf.mxu0
  %v114 = vadd.f32 %v46, %v113
  %v115 = vpop.f32.mrf.mxu0
  %v116 = vpop.f32.mrf.mxu0
  %v117 = vadd.f32 %v46, %v116
  %v118 = vpop.f32.mrf.mxu0
  %119 = vmatprep.mubr.bf16.mxu0 0
  %120 = vmatmul.mubr.bf16.gmra.mxu0 %v59
  %v121 = vpop.f32.mrf.mxu0
  %v122 = vadd.f32 %v46, %v121
  %v123 = vpop.f32.mrf.mxu0
  %v124 = vpop.f32.mrf.mxu0
  %v125 = vadd.f32 %v46, %v124
  %v126 = vpop.f32.mrf.mxu0
  %127 = vmatprep.mubr.bf16.mxu0 0
  %128 = vmatmul.mubr.bf16.gmra.mxu0 %v62
  %v129 = vpop.f32.mrf.mxu0
  %v130 = vadd.f32 %v46, %v129
  %v131 = vpop.f32.mrf.mxu0
  %v132 = vpop.f32.mrf.mxu0
  %v133 = vadd.f32 %v46, %v132
  %v134 = vpop.f32.mrf.mxu0
  %135 = vmatprep.mubr.bf16.mxu0 0
  %136 = vmatmul.mubr.bf16.gmra.mxu0 %v65
  %v137 = vpop.f32.mrf.mxu0
  %v138 = vadd.f32 %v46, %v137
  %v139 = vpop.f32.mrf.mxu0
  %v140 = vpop.f32.mrf.mxu0
  %v141 = vadd.f32 %v46, %v140
  %v142 = vpop.f32.mrf.mxu0
  %143 = vmatprep.mubr.bf16.mxu0 0
  %144 = vmatmul.mubr.bf16.gmra.mxu0 %v68
  %v145 = vpop.f32.mrf.mxu0
  %v146 = vadd.f32 %v46, %v145
  %v147 = vpop.f32.mrf.mxu0
  %v148 = vpop.f32.mrf.mxu0
  %v149 = vadd.f32 %v46, %v148
  %v150 = vpop.f32.mrf.mxu0
  %151 = vmatprep.mubr.bf16.mxu0 0
  %152 = vmatmul.mubr.bf16.gmra.mxu0 %v71
  %v153 = vpop.f32.mrf.mxu0
  %v154 = vadd.f32 %v46, %v153
  %v155 = vpop.f32.mrf.mxu0
  %v156 = vpop.f32.mrf.mxu0
  %v157 = vadd.f32 %v46, %v156
  %v158 = vpop.f32.mrf.mxu0
  %159 = vmatprep.mubr.bf16.mxu0 0
  %160 = vmatmul.mubr.bf16.gmra.mxu0 %v74
  %v161 = vpop.f32.mrf.mxu0
  %v162 = vadd.f32 %v46, %v161
  %v163 = vpop.f32.mrf.mxu0
  %v164 = vpop.f32.mrf.mxu0
  %v165 = vadd.f32 %v46, %v164
  %v166 = vpop.f32.mrf.mxu0
  %167 = vmatprep.mubr.bf16.mxu0 0
  %168 = vmatmul.mubr.bf16.gmra.mxu0 %v77
  %v169 = vpop.f32.mrf.mxu0
  %v170 = vadd.f32 %v46, %v169
  %v171 = vpop.f32.mrf.mxu0
  %v172 = vpop.f32.mrf.mxu0
  %v173 = vadd.f32 %v46, %v172
  %v174 = vpop.f32.mrf.mxu0
  %175 = vdwg.mxu0
  %vm176 = vcmask 261120
  %177 = vst.msk [vmem:[%s3] sm:$0xff] %vm176, %v114
  %178 = vst.msk [vmem:[%s3 + $0x8] sm:$0xff] %vm176, %v117
  %179 = vst.msk [vmem:[%s3 + $0x10] sm:$0xff] %vm176, %v122
  %180 = vst.msk [vmem:[%s3 + $0x18] sm:$0xff] %vm176, %v125
  %181 = vst.msk [vmem:[%s3 + $0x20] sm:$0xff] %vm176, %v130
  %182 = vst.msk [vmem:[%s3 + $0x28] sm:$0xff] %vm176, %v133
  %183 = vst.msk [vmem:[%s3 + $0x30] sm:$0xff] %vm176, %v138
  %184 = vst.msk [vmem:[%s3 + $0x38] sm:$0xff] %vm176, %v141
  %185 = vst.msk [vmem:[%s3 + $0x40] sm:$0xff] %vm176, %v146
  %186 = vst.msk [vmem:[%s3 + $0x48] sm:$0xff] %vm176, %v149
  %187 = vst.msk [vmem:[%s3 + $0x50] sm:$0xff] %vm176, %v154
  %188 = vst.msk [vmem:[%s3 + $0x58] sm:$0xff] %vm176, %v157
  %189 = vst.msk [vmem:[%s3 + $0x60] sm:$0xff] %vm176, %v162
  %190 = vst.msk [vmem:[%s3 + $0x68] sm:$0xff] %vm176, %v165
  %191 = vst.msk [vmem:[%s3 + $0x70] sm:$0xff] %vm176, %v170
  %192 = vst.msk [vmem:[%s3 + $0x78] sm:$0xff] %vm176, %v173
  // Predicated region
  $region14: #{tpu_custom_call.1} parent=0 // pred_check
    _
  $region15: #{tpu_custom_call.1} parent=0 // pred_check_branch
    %194 = sbr.rel (0) target = $region17
  $region16: #{tpu_custom_call.1} parent=0 // pred_region
    _
  $region17: #{tpu_custom_call.1} parent=0 // pred_fallthru
    _
  // Predicated region
  $region18: #{tpu_custom_call.1} parent=0 // pred_check
    _
  $region19: #{tpu_custom_call.1} parent=0 // pred_check_branch
    %196 = sbr.rel (0) target = $region21
  $region20: #{tpu_custom_call.1} parent=0 // pred_region
    _
  $region21: #{tpu_custom_call.1} parent=0 // pred_fallthru
    _

</llo_original>
